<compile_context>
chip_gen: v7x
topology: tpu7x:2x2x1
jax: 0.10.0
libtpu: 0.0.40
codegen_flags: <defaults>
</compile_context>

<pallas_src>
import functools

import jax
import jax.numpy as jnp
from jax.experimental import pallas as pl
from jax.experimental.pallas import tpu as pltpu


_LANE_BLOCK_CAP = 4096          # lanes per tile cap (multiple of 128)
_TILE_BYTES_CAP = 8 << 20       # max f32 bytes for the big streamed tile


def _round_up(v, m):
    return ((v + m - 1) // m) * m


def _round_down(v, m):
    return (v // m) * m


def _sublane_quantum(dtype):
    """Sublane multiple that fills a packed vreg for this dtype."""
    return max(8, 32 // jnp.dtype(dtype).itemsize)


@functools.lru_cache(maxsize=None)
def _vmem_limit_bytes():
    """Chip-aware scoped-VMEM budget (v5e/v6e: 128 MiB, v7x: 64 MiB)."""
    cap = 64 * 1024 * 1024
    try:
        cap = int(getattr(pltpu.get_tpu_info(), "vmem_capacity_bytes", cap)) or cap
    except Exception:
        pass
    return max(32 << 20, min(3 * cap // 4, cap - (16 << 20)))


def _tile_elems(vmem_limit):
    """Element budget for the big streamed tile (f32 accounting, ~6x headroom
    for double-buffered in/out plus compute temporaries)."""
    return max(8 * 128, min(vmem_limit // 6, _TILE_BYTES_CAP) // 4)


def _pick_row_block(rows, q, rb_cap, ensure_split):
    """Row block: multiple of the sublane quantum q (or the full extent)."""
    if rows < 2 * q:
        return rows
    rb = max(q, min(_round_down(rb_cap, q), _round_down(rows, q)))
    if ensure_split and rb >= rows:
        # Guarantee >=2 grid steps on the only shardable axis (v7x megacore).
        rb = max(q, _round_down((rows + 1) // 2, q))
    return rb


def _pick_channel_block(n, c, hw, vmem_limit):
    """Channel block for the fused init kernel, or None if it cannot fit."""
    per_channel = 6 * n * hw * 4          # conservative f32 working-set bytes
    if c <= 8:
        return c if c * per_channel <= vmem_limit else None
    cb_fit = vmem_limit // per_channel
    cb = min(_round_down(c, 8), _round_down(cb_fit, 8))
    if cb < 8:
        return None
    if pl.cdiv(c, cb) == 1 and c >= 16:
        # Prefer >=2 grid steps so v7x megacore can shard the init pass.
        cb = max(8, _round_down((c + 1) // 2, 8))
    return cb


# --------------------------------------------------------------------------
# Fused init kernel: per-channel mean + exact two-pass variance + normalize,
# all on one resident (N, cb, hw) block.  1 HBM read + 1 HBM write of x.
# --------------------------------------------------------------------------
def _fused_init_kernel(x_ref, z_ref, mean_ref, std_ref, *, m):
    x = x_ref[...].astype(jnp.float32)                  # (N, cb, hw)
    s = jnp.sum(x, axis=2, keepdims=True)               # lane reduce  (N, cb, 1)
    mean = jnp.sum(s, axis=0, keepdims=True) / m        # (1, cb, 1)
    xc = x - mean
    ss = jnp.sum(xc * xc, axis=2, keepdims=True)        # (N, cb, 1)
    var = jnp.sum(ss, axis=0, keepdims=True) / m        # exact two-pass variance
    std = jnp.sqrt(var) + 1e-6
    inv = 1.0 / std                                     # tiny per-channel divide
    z_ref[...] = (xc * inv).astype(z_ref.dtype)
    mean_ref[...] = mean[0]
    std_ref[...] = std[0]


def _fused_init(x3, cb, vmem_limit):
    n, c, hw = x3.shape
    grid = (pl.cdiv(c, cb),)
    kern = functools.partial(_fused_init_kernel, m=float(n * hw))
    z, mean, std = pl.pallas_call(
        kern,
        grid=grid,
        out_shape=(jax.ShapeDtypeStruct((n, c, hw), x3.dtype),
                   jax.ShapeDtypeStruct((c, 1), jnp.float32),
                   jax.ShapeDtypeStruct((c, 1), jnp.float32)),
        in_specs=[pl.BlockSpec((n, cb, hw), lambda i: (0, i, 0))],
        out_specs=(pl.BlockSpec((n, cb, hw), lambda i: (0, i, 0)),
                   pl.BlockSpec((cb, 1), lambda i: (i, 0)),
                   pl.BlockSpec((cb, 1), lambda i: (i, 0))),
        compiler_params=pltpu.CompilerParams(
            dimension_semantics=("parallel",),
            vmem_limit_bytes=vmem_limit),
    )(x3)
    return z, mean[:, 0], std[:, 0]


# --------------------------------------------------------------------------
# Fallback init path (when a whole channel block does not fit VMEM):
# streaming per-row sum / sum-of-squares, then the elementwise apply kernel.
# --------------------------------------------------------------------------
def _row_stats_kernel(x_ref, sum_ref, ssq_ref, *, hw, lb):
    t = pl.program_id(1)

    @pl.when(t == 0)
    def _():
        sum_ref[...] = jnp.zeros_like(sum_ref)
        ssq_ref[...] = jnp.zeros_like(ssq_ref)

    x = x_ref[...].astype(jnp.float32)                  # (rb, lb)
    # Mask out-of-range lanes of a ragged last lane tile.
    lane = jax.lax.broadcasted_iota(jnp.int32, x.shape, 1)
    x = jnp.where(t * lb + lane < hw, x, 0.0)

    # Lane-aligned accumulation into (rb, 128) partials: pure VPU adds, no
    # cross-lane XLU work in the steady state; lane-dense output stores.
    s = jnp.zeros(sum_ref.shape, jnp.float32)
    q = jnp.zeros(ssq_ref.shape, jnp.float32)
    for c in range(lb // 128):
        xc = x[:, c * 128:(c + 1) * 128]
        s = s + xc
        q = q + xc * xc
    sum_ref[...] += s
    ssq_ref[...] += q


def _row_stats(x_rows, vmem_limit):
    rows, hw = x_rows.shape
    q = _sublane_quantum(x_rows.dtype)
    elems = _tile_elems(vmem_limit)
    lb = min(_round_up(hw, 128), _LANE_BLOCK_CAP)
    rb = _pick_row_block(rows, q, max(q, elems // lb), ensure_split=True)
    grid = (pl.cdiv(rows, rb), pl.cdiv(hw, lb))
    kern = functools.partial(_row_stats_kernel, hw=hw, lb=lb)
    return pl.pallas_call(
        kern,
        grid=grid,
        out_shape=(jax.ShapeDtypeStruct((rows, 128), jnp.float32),
                   jax.ShapeDtypeStruct((rows, 128), jnp.float32)),
        in_specs=[pl.BlockSpec((rb, lb), lambda r, t: (r, t))],
        out_specs=(pl.BlockSpec((rb, 128), lambda r, t: (r, 0)),
                   pl.BlockSpec((rb, 128), lambda r, t: (r, 0))),
        compiler_params=pltpu.CompilerParams(
            dimension_semantics=("parallel", "arbitrary"),
            vmem_limit_bytes=vmem_limit),
    )(x_rows)


# --------------------------------------------------------------------------
# Elementwise normalize: z = (x - bias) * inv_scale (lane broadcast).
# --------------------------------------------------------------------------
def _apply_kernel(x_ref, p_ref, z_ref):
    x = x_ref[...].astype(jnp.float32)
    b = p_ref[:, 0:1]
    inv = p_ref[:, 1:2]
    z_ref[...] = ((x - b) * inv).astype(z_ref.dtype)


def _apply(x_rows, params, vmem_limit):
    rows, hw = x_rows.shape
    q = _sublane_quantum(x_rows.dtype)
    elems = _tile_elems(vmem_limit)
    lb = min(_round_up(hw, 128), _LANE_BLOCK_CAP)
    lane_steps = pl.cdiv(hw, lb)
    rb = _pick_row_block(rows, q, max(q, elems // lb),
                         ensure_split=(lane_steps == 1))
    grid = (pl.cdiv(rows, rb), lane_steps)
    return pl.pallas_call(
        _apply_kernel,
        grid=grid,
        out_shape=jax.ShapeDtypeStruct((rows, hw), x_rows.dtype),
        in_specs=[pl.BlockSpec((rb, lb), lambda r, t: (r, t)),
                  pl.BlockSpec((rb, 2), lambda r, t: (r, 0))],
        out_specs=pl.BlockSpec((rb, lb), lambda r, t: (r, t)),
        compiler_params=pltpu.CompilerParams(
            dimension_semantics=("parallel", "parallel"),
            vmem_limit_bytes=vmem_limit),
    )(x_rows, params)


# --------------------------------------------------------------------------
# Forward wrapper.
# --------------------------------------------------------------------------
@functools.partial(jax.jit, static_argnames=("initialized", "use_fused"))
def actnorm_forward(x, scale, bias, initialized, use_fused=True):
    """x: (N, C, H, W); scale/bias: (1, C, 1, 1). Returns (z, scale, bias)."""
    N, C, H, W = x.shape
    hw = H * W
    rows = N * C
    vmem_limit = _vmem_limit_bytes()

    if not initialized:
        cb = _pick_channel_block(N, C, hw, vmem_limit) if use_fused else None
        if cb is not None:
            # Fused stats + normalize: 1 read + 1 write of x, exact two-pass var.
            z3, mean_c, std_c = _fused_init(x.reshape(N, C, hw), cb, vmem_limit)
            scale = std_c.reshape(1, C, 1, 1)
            bias = mean_c.reshape(1, C, 1, 1)
            return z3.reshape(N, C, H, W), scale, bias

        # Streaming fallback (note: one-pass variance E[x^2]-mean^2 in f32).
        x_rows = x.reshape(rows, hw)
        row_sum, row_ssq = _row_stats(x_rows, vmem_limit)
        m = N * hw
        c_sum = row_sum.reshape(N, C, -1).sum(axis=(0, 2))
        c_ssq = row_ssq.reshape(N, C, -1).sum(axis=(0, 2))
        mean = c_sum / m
        var = jnp.maximum(c_ssq / m - mean * mean, 0.0)
        std = jnp.sqrt(var) + 1e-6
        bias = mean.reshape(1, C, 1, 1)
        scale = std.reshape(1, C, 1, 1)

    # Per-channel params kept in f32; divide hoisted out of the kernel and the
    # (bias, inv_scale) pair packed into one small (rows, 2) operand.
    bias_c = bias.reshape(C).astype(jnp.float32)
    inv_c = 1.0 / scale.reshape(C).astype(jnp.float32)
    params = jnp.stack(
        [jnp.broadcast_to(bias_c[None, :], (N, C)).reshape(rows),
         jnp.broadcast_to(inv_c[None, :], (N, C)).reshape(rows)], axis=1)

    z_rows = _apply(x.reshape(rows, hw), params, vmem_limit)
    z = z_rows.reshape(N, C, H, W)
    return (z,
            scale.reshape(1, C, 1, 1).astype(jnp.float32),
            bias.reshape(1, C, 1, 1).astype(jnp.float32))


def _reference(x, scale, bias, initialized):
    """Pure-JAX reference mirroring the PyTorch module."""
    if not initialized:
        C = x.shape[1]
        flat = jnp.transpose(x, (1, 0, 2, 3)).reshape(C, -1)
        mean = flat.mean(axis=1)
        std = jnp.sqrt(((flat - mean[:, None]) ** 2).mean(axis=1))  # unbiased=False
        bias = mean.reshape(1, C, 1, 1)
        scale = (std + 1e-6).reshape(1, C, 1, 1)
    z = (x - bias) / scale
    return z, scale, bias


if __name__ == "__main__":
    key = jax.random.PRNGKey(0)
    N, C, H, W = 2, 4, 16, 16
    x = jax.random.normal(key, (N, C, H, W), dtype=jnp.float32) * 2.5 + 0.7

    scale0 = jnp.ones((1, C, 1, 1), dtype=jnp.float32)
    bias0 = jnp.zeros((1, C, 1, 1), dtype=jnp.float32)

    z_ref, scale_ref, bias_ref = _reference(x, scale0, bias0, initialized=False)

    # 1) First forward, fused init path (stats + normalize in one pass).
    z0, scale1, bias1 = actnorm_forward(x, scale0, bias0, initialized=False)
    jax.block_until_ready(z0)
    assert jnp.allclose(z0, z_ref, atol=2e-5, rtol=2e-5)
    assert jnp.allclose(scale1, scale_ref, atol=2e-5, rtol=2e-5)
    assert jnp.allclose(bias1, bias_ref, atol=2e-5, rtol=2e-5)

    # 2) First forward via the streaming fallback path (stats + apply kernels).
    z0b, scale1b, bias1b = actnorm_forward(x, scale0, bias0,
                                           initialized=False, use_fused=False)
    jax.block_until_ready(z0b)
    assert jnp.allclose(z0b, z_ref, atol=2e-5, rtol=2e-5)
    assert jnp.allclose(scale1b, scale_ref, atol=2e-5, rtol=2e-5)
    assert jnp.allclose(bias1b, bias_ref, atol=2e-5, rtol=2e-5)

    # 3) Second forward: initialized path z = (x - bias) / scale.
    z1, _, _ = actnorm_forward(x, scale1, bias1, initialized=True)
    jax.block_until_ready(z1)
    z1_ref, _, _ = _reference(x, scale1, bias1, initialized=True)
    assert jnp.allclose(z1, z1_ref, atol=2e-5, rtol=2e-5)

    print("KERNEL_OK")
</pallas_src>

<mosaic_0001>
module attributes {stable_mosaic.version = 11 : i64} {
  func.func @_fused_init_kernel(%arg0: i32, %arg1: memref<2x4x256xf32, #tpu.memory_space<vmem>>, %arg2: memref<2x4x256xf32, #tpu.memory_space<vmem>>, %arg3: memref<4x1xf32, #tpu.memory_space<vmem>>, %arg4: memref<4x1xf32, #tpu.memory_space<vmem>>) attributes {dimension_semantics = [#tpu.dimension_semantics<parallel>], iteration_bounds = array<i64: 1>, scalar_prefetch = 0 : i64, scratch_operands = 0 : i64, tpu.core_type = #tpu.core_type<tc>, window_params = [{transform_indices = @transform_0, window_bounds = array<i64: 2, 4, 256>}, {transform_indices = @transform_1, window_bounds = array<i64: 2, 4, 256>}, {transform_indices = @transform_2, window_bounds = array<i64: 4, 1>}, {transform_indices = @transform_3, window_bounds = array<i64: 4, 1>}]} {
    %c0 = arith.constant 0 : index
    %c0_0 = arith.constant 0 : index
    %c0_1 = arith.constant 0 : index
    %0 = vector.load %arg1[%c0, %c0_0, %c0_1] : memref<2x4x256xf32, #tpu.memory_space<vmem>>, vector<2x4x256xf32>
    %cst = arith.constant dense<0.000000e+00> : vector<2x4xf32>
    %1 = vector.multi_reduction <add>, %0, %cst [2] : vector<2x4x256xf32> to vector<2x4xf32>
    %2 = vector.shape_cast %1 : vector<2x4xf32> to vector<2x4x1xf32>
    %cst_2 = arith.constant dense<0.000000e+00> : vector<4x1xf32>
    %3 = vector.multi_reduction <add>, %2, %cst_2 [0] : vector<2x4x1xf32> to vector<4x1xf32>
    %4 = vector.shape_cast %3 : vector<4x1xf32> to vector<1x4x1xf32>
    %cst_3 = arith.constant 5.120000e+02 : f32
    %5 = vector.broadcast %cst_3 : f32 to vector<1x4x1xf32>
    %6 = arith.divf %4, %5 : vector<1x4x1xf32>
    %7 = vector.broadcast %6 : vector<1x4x1xf32> to vector<2x4x256xf32>
    %8 = arith.subf %0, %7 : vector<2x4x256xf32>
    %9 = arith.mulf %8, %8 : vector<2x4x256xf32>
    %cst_4 = arith.constant dense<0.000000e+00> : vector<2x4xf32>
    %10 = vector.multi_reduction <add>, %9, %cst_4 [2] : vector<2x4x256xf32> to vector<2x4xf32>
    %11 = vector.shape_cast %10 : vector<2x4xf32> to vector<2x4x1xf32>
    %cst_5 = arith.constant dense<0.000000e+00> : vector<4x1xf32>
    %12 = vector.multi_reduction <add>, %11, %cst_5 [0] : vector<2x4x1xf32> to vector<4x1xf32>
    %13 = vector.shape_cast %12 : vector<4x1xf32> to vector<1x4x1xf32>
    %cst_6 = arith.constant 5.120000e+02 : f32
    %14 = vector.broadcast %cst_6 : f32 to vector<1x4x1xf32>
    %15 = arith.divf %13, %14 : vector<1x4x1xf32>
    %16 = math.sqrt %15 : vector<1x4x1xf32>
    %cst_7 = arith.constant 9.99999997E-7 : f32
    %17 = vector.broadcast %cst_7 : f32 to vector<1x4x1xf32>
    %18 = arith.addf %16, %17 : vector<1x4x1xf32>
    %cst_8 = arith.constant 1.000000e+00 : f32
    %19 = vector.broadcast %cst_8 : f32 to vector<1x4x1xf32>
    %20 = arith.divf %19, %18 : vector<1x4x1xf32>
    %21 = vector.broadcast %20 : vector<1x4x1xf32> to vector<2x4x256xf32>
    %22 = arith.mulf %8, %21 : vector<2x4x256xf32>
    %c0_9 = arith.constant 0 : index
    %c0_10 = arith.constant 0 : index
    %c0_11 = arith.constant 0 : index
    %23 = vector.load %arg2[%c0_9, %c0_10, %c0_11] : memref<2x4x256xf32, #tpu.memory_space<vmem>>, vector<2x4x256xf32>
    tpu.vector_store %arg2[%c0_9, %c0_10, %c0_11], %22 {strides = array<i32>} : memref<2x4x256xf32, #tpu.memory_space<vmem>>, vector<2x4x256xf32>,
    %24 = vector.shape_cast %6 : vector<1x4x1xf32> to vector<4x1xf32>
    %c0_12 = arith.constant 0 : index
    %c0_13 = arith.constant 0 : index
    %25 = vector.load %arg3[%c0_12, %c0_13] : memref<4x1xf32, #tpu.memory_space<vmem>>, vector<4x1xf32>
    tpu.vector_store %arg3[%c0_12, %c0_13], %24 {strides = array<i32>} : memref<4x1xf32, #tpu.memory_space<vmem>>, vector<4x1xf32>,
    %26 = vector.shape_cast %18 : vector<1x4x1xf32> to vector<4x1xf32>
    %c0_14 = arith.constant 0 : index
    %c0_15 = arith.constant 0 : index
    %27 = vector.load %arg4[%c0_14, %c0_15] : memref<4x1xf32, #tpu.memory_space<vmem>>, vector<4x1xf32>
    tpu.vector_store %arg4[%c0_14, %c0_15], %26 {strides = array<i32>} : memref<4x1xf32, #tpu.memory_space<vmem>>, vector<4x1xf32>,
    return
  }
  func.func @transform_0(%arg0: i32) -> (i32, i32, i32) {
    %c0_i32 = arith.constant 0 : i32
    %c0_i32_0 = arith.constant 0 : i32
    %c0_i32_1 = arith.constant 0 : i32
    return %c0_i32, %arg0, %c0_i32_0 : i32, i32, i32
  }
  func.func @transform_1(%arg0: i32) -> (i32, i32, i32) {
    %c0_i32 = arith.constant 0 : i32
    %c0_i32_0 = arith.constant 0 : i32
    %c0_i32_1 = arith.constant 0 : i32
    return %c0_i32, %arg0, %c0_i32_0 : i32, i32, i32
  }
  func.func @transform_2(%arg0: i32) -> (i32, i32) {
    %c0_i32 = arith.constant 0 : i32
    %c0_i32_0 = arith.constant 0 : i32
    return %arg0, %c0_i32 : i32, i32
  }
  func.func @transform_3(%arg0: i32) -> (i32, i32) {
    %c0_i32 = arith.constant 0 : i32
    %c0_i32_0 = arith.constant 0 : i32
    return %arg0, %c0_i32 : i32, i32
  }
}

</mosaic_0001>

<llo_original>
// kernel: actnorm_forward.1
$region0: #{actnorm_forward.1}
  #allocation0 [shape = 'u32[]', space=smem, size = 0x4, offset = 0x4, fixed_abs, tag = 'smem constant byte address 0x4 - core index']
  #allocation1 [shape = 'u32[144,128]{1,0:T(1,128)}', space=vmem, size = 0x12000, scoped, tag = 'internal scratch']
  %s0 = inlined_call_operand.vmem [shape: f32[2,4,256], index: 0, kind: input, shape index: {}]
  %s1 = inlined_call_operand.vmem [shape: f32[2,4,256], index: 1, kind: output, shape index: {0}]
  %s2 = inlined_call_operand.vmem [shape: f32[4,1], index: 2, kind: output, shape index: {1}]
  %s3 = inlined_call_operand.vmem [shape: f32[4,1], index: 3, kind: output, shape index: {2}]
  %4 = xla_tuple %s1, %s2, %s3
  %s5 = sld [smem:[#allocation0]]
  $region30: #{actnorm_forward.1} parent=0
    _
  %s7 = ssub.s32 1, %s5
  %s8 = scalar_select 0, %s7, %s5
  // Predicated region
  $region2: #{actnorm_forward.1} parent=0 // pred_check
    _
  $region3: #{actnorm_forward.1} parent=0 // pred_check_branch
    %10 = sbr.rel (0) target = $region5
  $region4: #{actnorm_forward.1} parent=0 // pred_region
    _
  $region5: #{actnorm_forward.1} parent=0 // pred_fallthru
    _
  %v11 = vld [vmem:[%s0] sm:$0xff]
  %v12 = vld [vmem:[%s0 + $0x8] sm:$0xff]
  %v15 = vcombine.high %v11, %v11
  %v16 = vcombine.high %v12, %v12
  %vm19 = vcmask 1043456
  %v20 = vsel %vm19, %v11, 0.0
  %v21 = vsel %vm19, %v15, 0.0
  %v22 = vadd.f32 %v20, %v21
  %23 = vadd.xlane.f32.xlu0 %v22
  %v24 = vpop.xlane.xlu0 %23
  %v25 = vsel %vm19, %v12, 0.0
  %v26 = vsel %vm19, %v16, 0.0
  %v27 = vadd.f32 %v25, %v26
  %28 = vadd.xlane.f32.xlu0 %v27
  %v29 = vpop.xlane.xlu0 %28
  %v30 = vsel %vm19, %v24, 0.0
  %v31 = vsel %vm19, %v29, 0.0
  %v32 = vadd.f32 %v30, %v31
  %v33 = vrcp.pop 512.0
  %v34 = vmul.f32 %v32, %v33
  %v37 = vunpack.c.l.s4 839922192
  %v38 = vunpack.c.0.s8 %v37
  %v39 = vlaneseq
  %v40 = vshrl.u32 %v39, 7
  %v41 = vsub.s32 %v38, %v40
  %v42 = vrot.slane %v34, %v41
  %v44 = vsub.f32 %v11, %v42
  %v45 = vsub.f32 %v12, %v42
  %v46 = vmul.f32 %v44, %v44
  %v47 = vmul.f32 %v45, %v45
  %v50 = vcombine.high %v46, %v46
  %v51 = vcombine.high %v47, %v47
  %v54 = vsel %vm19, %v46, 0.0
  %v55 = vsel %vm19, %v50, 0.0
  %v56 = vadd.f32 %v54, %v55
  %57 = vadd.xlane.f32.xlu0 %v56
  %v58 = vpop.xlane.xlu0 %57
  %v59 = vsel %vm19, %v47, 0.0
  %v60 = vsel %vm19, %v51, 0.0
  %v61 = vadd.f32 %v59, %v60
  %62 = vadd.xlane.f32.xlu0 %v61
  %v63 = vpop.xlane.xlu0 %62
  %v64 = vsel %vm19, %v58, 0.0
  %v65 = vsel %vm19, %v63, 0.0
  %v66 = vadd.f32 %v64, %v65
  %v67 = vmul.f32 %v66, %v33
  %v68 = vrsqrt.pop %v67
  %v69 = vmul.f32 %v67, %v68
  %vm70 = vcmp.eq.f32.partialorder %v67, inf
  %v71 = vsel %vm70, %v67, %v69
  %vm72 = vcmp.eq.f32.partialorder %v67, 0.0
  %v73 = vand.u32 %v67, 2147483648
  %v74 = vsel %vm72, %v73, %v71
  %v75 = vadd.f32 %v74, 1e-06
  %v76 = vrcp.pop %v75
  %v77 = vmul.f32 1.0, %v76
  %v80 = vunpack.c.l.s4 839922192
  %v81 = vunpack.c.0.s8 %v80
  %v82 = vlaneseq
  %v83 = vshrl.u32 %v82, 7
  %v84 = vsub.s32 %v81, %v83
  %v85 = vrot.slane %v77, %v84
  %v87 = vmul.f32 %v44, %v85
  %v88 = vmul.f32 %v45, %v85
  %89 = vst [vmem:[%s1] sm:$0xff] %v87
  %90 = vst [vmem:[%s1 + $0x8] sm:$0xff] %v88
  %vm91 = vcmask 3072
  %92 = vst.msk [vmem:[%s2] sm:$0xf] %vm91, %v34
  %93 = vst.msk [vmem:[%s3] sm:$0xf] %vm91, %v75
  // Predicated region
  $region6: #{actnorm_forward.1} parent=0 // pred_check
    _
  $region7: #{actnorm_forward.1} parent=0 // pred_check_branch
    %95 = sbr.rel (0) target = $region9
  $region8: #{actnorm_forward.1} parent=0 // pred_region
    _
  $region9: #{actnorm_forward.1} parent=0 // pred_fallthru
    _
  // Predicated region
  $region10: #{actnorm_forward.1} parent=0 // pred_check
    _
  $region11: #{actnorm_forward.1} parent=0 // pred_check_branch
    %97 = sbr.rel (0) target = $region13
  $region12: #{actnorm_forward.1} parent=0 // pred_region
    _
  $region13: #{actnorm_forward.1} parent=0 // pred_fallthru
    _
  // Predicated region
  $region14: #{actnorm_forward.1} parent=0 // pred_check
    _
  $region15: #{actnorm_forward.1} parent=0 // pred_check_branch
    %99 = sbr.rel (0) target = $region17
  $region16: #{actnorm_forward.1} parent=0 // pred_region
    _
  $region17: #{actnorm_forward.1} parent=0 // pred_fallthru
    _
  // Predicated region
  $region18: #{actnorm_forward.1} parent=0 // pred_check
    _
  $region19: #{actnorm_forward.1} parent=0 // pred_check_branch
    %101 = sbr.rel (0) target = $region21
  $region20: #{actnorm_forward.1} parent=0 // pred_region
    _
  $region21: #{actnorm_forward.1} parent=0 // pred_fallthru
    _
  // Predicated region
  $region22: #{actnorm_forward.1} parent=0 // pred_check
    _
  $region23: #{actnorm_forward.1} parent=0 // pred_check_branch
    %103 = sbr.rel (0) target = $region25
  $region24: #{actnorm_forward.1} parent=0 // pred_region
    _
  $region25: #{actnorm_forward.1} parent=0 // pred_fallthru
    _
  // Predicated region
  $region26: #{actnorm_forward.1} parent=0 // pred_check
    _
  $region27: #{actnorm_forward.1} parent=0 // pred_check_branch
    %105 = sbr.rel (0) target = $region29
  $region28: #{actnorm_forward.1} parent=0 // pred_region
    _
  $region29: #{actnorm_forward.1} parent=0 // pred_fallthru
    _

</llo_original>
